<compile_context>
chip_gen: v6e
topology: v6e:2x2x1
jax: 0.10.0
libtpu: 0.0.40
codegen_flags: <defaults>
</compile_context>

<pallas_src>
import jax
import jax.numpy as jnp
from jax.experimental import pallas as pl
from jax.experimental.pallas import tpu as pltpu


def _round_up(x, m):
    return ((x + m - 1) // m) * m


def meta_kernel(x_ref, w_ref, b_ref, o_ref):
    # x_ref: (TB, D) f32   w_ref: (3, R, P) bf16   b_ref: (3, P) f32   o_ref: (TB, P) f32
    D = x_ref.shape[-1]   # kernel input width (multiple of 16, <= R)
    P = o_ref.shape[-1]   # hidden / fused-head lane width (multiple of 128, <= R)

    x = x_ref[...].astype(jnp.bfloat16)
    h1 = jnp.dot(x, w_ref[0, :D, :], preferred_element_type=jnp.float32) + b_ref[0:1, :]
    h1 = jnp.maximum(h1, 0.0).astype(jnp.bfloat16)
    h2 = jnp.dot(h1, w_ref[1, :P, :], preferred_element_type=jnp.float32) + b_ref[1:2, :]
    h2 = jnp.maximum(h2, 0.0).astype(jnp.bfloat16)
    # Fused 3-head matmul -> one lane-dense [TB, P] store. Only the first
    # (s1+s2+s3) lanes are meaningful; the rest are exact zeros (zero-padded
    # bf16 weights + zero biases, and relu(0)=0 upstream).
    o_ref[...] = jnp.dot(h2, w_ref[2, :P, :], preferred_element_type=jnp.float32) + b_ref[2:3, :]


def pack_params(params, meta_input_size, meta_hidden_size,
                s1_output_size, s2_output_size, s3_output_size):
    """Pack the 10 Linear params into one bf16 weight slab + one f32 bias slab.

    Weights are stored as [in, out] (transpose of nn.Linear.weight). Hidden /
    head lanes are zero-padded to P (multiple of 128); the slab row count R is
    max(P, input width rounded to 16) so layer 0 can consume an unpadded x.
    Zero padding is numerically exact through every layer.
    """
    (w1, b1, w2, b2, w3a, b3a, w3b, b3b, w3c, b3c) = params
    s_total = s1_output_size + s2_output_size + s3_output_size
    P = _round_up(max(meta_hidden_size, s_total), 128)   # keep P=128: kernel is BW-bound, not MXU-bound
    D = _round_up(meta_input_size, 16)                   # bf16 sublane-aligned input width
    R = max(P, D)

    w3 = jnp.concatenate([w3a, w3b, w3c], axis=1)        # [H, s_total]
    b3 = jnp.concatenate([b3a, b3b, b3c], axis=1)        # [1, s_total]

    w_slab = jnp.zeros((3, R, P), jnp.float32)
    w_slab = w_slab.at[0, :meta_input_size, :meta_hidden_size].set(w1)
    w_slab = w_slab.at[1, :meta_hidden_size, :meta_hidden_size].set(w2)
    w_slab = w_slab.at[2, :meta_hidden_size, :s_total].set(w3)
    w_slab = w_slab.astype(jnp.bfloat16)

    b_slab = jnp.zeros((3, P), jnp.float32)
    b_slab = b_slab.at[0, :meta_hidden_size].set(b1[0])
    b_slab = b_slab.at[1, :meta_hidden_size].set(b2[0])
    b_slab = b_slab.at[2, :s_total].set(b3[0])
    return w_slab, b_slab


def meta_model_forward(x, w_slab, b_slab, out_sizes, *, block_b=1024):
    """Returns (s1_out, s2_out, s3_out), matching METAModel.forward.

    block_b: max batch tile (multiple of 8). Large tiles amortize the ~0.35us
    per-grid-step overhead; the tile is auto-capped so (a) v7x keeps >=2
    parallel grid steps for its two TensorCores and (b) tail padding stays
    bounded.
    """
    B, d_in = x.shape
    _, R, P = w_slab.shape
    s1, s2, s3 = out_sizes
    D = _round_up(d_in, 16)

    # --- batch tile selection ---
    b8 = _round_up(B, 8)
    tb = min(block_b, b8)
    # v7x: keep at least 2 grid steps (when worthwhile) so the "parallel" batch
    # axis shards across both TensorCores; harmless on 1-TC v5e/v6e.
    half = _round_up((b8 + 1) // 2, 8)
    if half >= 256:
        tb = min(tb, half)
    b_pad = _round_up(b8, tb)
    # Bound tail-padding waste to < ~12.5% of B (64-row floor).
    while tb > 256 and (b_pad - B) > max(B // 8, 64):
        tb = max(_round_up(tb // 2, 8), 8)
        b_pad = _round_up(b8, tb)

    # x keeps its narrow native lane width — no 128-lane padding pass.
    if b_pad == B and D == d_in:
        x_p = x.astype(jnp.float32)
    else:
        x_p = jnp.zeros((b_pad, D), jnp.float32).at[:B, :d_in].set(x)

    grid = (b_pad // tb,)
    out = pl.pallas_call(
        meta_kernel,
        out_shape=jax.ShapeDtypeStruct((b_pad, P), jnp.float32),
        grid=grid,
        in_specs=[
            pl.BlockSpec((tb, D), lambda i: (i, 0)),        # x: batch-tiled, narrow lanes
            pl.BlockSpec((3, R, P), lambda i: (0, 0, 0)),   # bf16 weights: resident
            pl.BlockSpec((3, P), lambda i: (0, 0)),         # f32 biases: resident
        ],
        out_specs=pl.BlockSpec((tb, P), lambda i: (i, 0)),  # lane-dense 128-wide slab
        compiler_params=pltpu.CompilerParams(
            dimension_semantics=("parallel",)),
    )(x_p, w_slab, b_slab)

    out = out[:B]
    return (out[:, :s1], out[:, s1:s1 + s2], out[:, s1 + s2:s1 + s2 + s3])


def init_params(key, meta_input_size, meta_hidden_size,
                s1_output_size, s2_output_size, s3_output_size):
    """Deterministic init mimicking nn.Linear's U(-1/sqrt(fan_in), 1/sqrt(fan_in))."""
    keys = jax.random.split(key, 10)

    def linear(kw, kb, fan_in, fan_out):
        bound = 1.0 / jnp.sqrt(fan_in)
        # stored as [in, out] so the kernel computes x @ W
        w = jax.random.uniform(kw, (fan_in, fan_out), jnp.float32, -bound, bound)
        b = jax.random.uniform(kb, (1, fan_out), jnp.float32, -bound, bound)
        return w, b

    w1, b1 = linear(keys[0], keys[1], meta_input_size, meta_hidden_size)
    w2, b2 = linear(keys[2], keys[3], meta_hidden_size, meta_hidden_size)
    w3a, b3a = linear(keys[4], keys[5], meta_hidden_size, s1_output_size)
    w3b, b3b = linear(keys[6], keys[7], meta_hidden_size, s2_output_size)
    w3c, b3c = linear(keys[8], keys[9], meta_hidden_size, s3_output_size)
    return (w1, b1, w2, b2, w3a, b3a, w3b, b3b, w3c, b3c)


def reference_forward(x, params):
    (w1, b1, w2, b2, w3a, b3a, w3b, b3b, w3c, b3c) = params
    h1 = jnp.maximum(x @ w1 + b1, 0.0)
    h2 = jnp.maximum(h1 @ w2 + b2, 0.0)
    return (h2 @ w3a + b3a, h2 @ w3b + b3b, h2 @ w3c + b3c)


if __name__ == "__main__":
    meta_input_size = 32
    meta_hidden_size = 50
    s1_output_size = 2
    s2_output_size = 2
    s3_output_size = 2
    batch = 8

    key = jax.random.PRNGKey(0)
    k_x, k_p = jax.random.split(key)

    x = jax.random.normal(k_x, (batch, meta_input_size), jnp.float32)
    params = init_params(k_p, meta_input_size, meta_hidden_size,
                         s1_output_size, s2_output_size, s3_output_size)

    # Pack once (outside the kernel) into 2 resident operands.
    w_slab, b_slab = pack_params(params, meta_input_size, meta_hidden_size,
                                 s1_output_size, s2_output_size, s3_output_size)

    outs = meta_model_forward(
        x, w_slab, b_slab,
        (s1_output_size, s2_output_size, s3_output_size))
    outs = jax.block_until_ready(outs)

    refs = reference_forward(x, params)
    for o, r in zip(outs, refs):
        assert o.shape == r.shape
        # bf16 weights/activations with f32 accumulation -> relaxed tolerance.
        assert jnp.allclose(o, r, atol=2e-2, rtol=2e-2), "mismatch vs reference"

    print("KERNEL_OK")
</pallas_src>

<mosaic_0001>
module attributes {stable_mosaic.version = 11 : i64} {
  func.func @meta_kernel(%arg0: i32, %arg1: memref<8x32xf32, #tpu.memory_space<vmem>>, %arg2: memref<3x128x128xbf16, #tpu.memory_space<vmem>>, %arg3: memref<3x128xf32, #tpu.memory_space<vmem>>, %arg4: memref<8x128xf32, #tpu.memory_space<vmem>>) attributes {dimension_semantics = [#tpu.dimension_semantics<parallel>], iteration_bounds = array<i64: 1>, scalar_prefetch = 0 : i64, scratch_operands = 0 : i64, tpu.core_type = #tpu.core_type<tc>, window_params = [{transform_indices = @transform_0, window_bounds = array<i64: 8, 32>}, {pipeline_mode = #tpu.pipeline_mode<synchronous>, transform_indices = @transform_1, window_bounds = array<i64: 3, 128, 128>}, {pipeline_mode = #tpu.pipeline_mode<synchronous>, transform_indices = @transform_2, window_bounds = array<i64: 3, 128>}, {transform_indices = @transform_3, window_bounds = array<i64: 8, 128>}]} {
    %c0 = arith.constant 0 : index
    %c0_0 = arith.constant 0 : index
    %0 = vector.load %arg1[%c0, %c0_0] : memref<8x32xf32, #tpu.memory_space<vmem>>, vector<8x32xf32>
    %1 = arith.truncf %0 : vector<8x32xf32> to vector<8x32xbf16>
    %c0_1 = arith.constant 0 : index
    %c0_2 = arith.constant 0 : index
    %c0_3 = arith.constant 0 : index
    %2 = vector.load %arg2[%c0_1, %c0_2, %c0_3] : memref<3x128x128xbf16, #tpu.memory_space<vmem>>, vector<1x32x128xbf16>
    %3 = vector.shape_cast %2 : vector<1x32x128xbf16> to vector<32x128xbf16>
    %cst = arith.constant dense<0.000000e+00> : vector<8x128xf32>
    %4 = tpu.matmul %1, %3, %cst {dimension_numbers = #tpu.dot_dimension_numbers<[1], [0], [0], [1], [0, 0, 1, 1], [], []>} : vector<8x32xbf16>, vector<32x128xbf16>, vector<8x128xf32> -> vector<8x128xf32>
    %c0_4 = arith.constant 0 : index
    %c0_5 = arith.constant 0 : index
    %5 = vector.load %arg3[%c0_4, %c0_5] : memref<3x128xf32, #tpu.memory_space<vmem>>, vector<1x128xf32>
    %6 = vector.broadcast %5 : vector<1x128xf32> to vector<8x128xf32>
    %7 = arith.addf %4, %6 : vector<8x128xf32>
    %cst_6 = arith.constant 0.000000e+00 : f32
    %8 = vector.broadcast %cst_6 : f32 to vector<8x128xf32>
    %9 = arith.maximumf %7, %8 : vector<8x128xf32>
    %10 = arith.truncf %9 : vector<8x128xf32> to vector<8x128xbf16>
    %c1 = arith.constant 1 : index
    %c0_7 = arith.constant 0 : index
    %c0_8 = arith.constant 0 : index
    %11 = vector.load %arg2[%c1, %c0_7, %c0_8] : memref<3x128x128xbf16, #tpu.memory_space<vmem>>, vector<1x128x128xbf16>
    %12 = vector.shape_cast %11 : vector<1x128x128xbf16> to vector<128x128xbf16>
    %cst_9 = arith.constant dense<0.000000e+00> : vector<8x128xf32>
    %13 = tpu.matmul %10, %12, %cst_9 {dimension_numbers = #tpu.dot_dimension_numbers<[1], [0], [0], [1], [0, 0, 1, 1], [], []>} : vector<8x128xbf16>, vector<128x128xbf16>, vector<8x128xf32> -> vector<8x128xf32>
    %c1_10 = arith.constant 1 : index
    %c0_11 = arith.constant 0 : index
    %14 = vector.load %arg3[%c1_10, %c0_11] : memref<3x128xf32, #tpu.memory_space<vmem>>, vector<1x128xf32>
    %15 = vector.broadcast %14 : vector<1x128xf32> to vector<8x128xf32>
    %16 = arith.addf %13, %15 : vector<8x128xf32>
    %cst_12 = arith.constant 0.000000e+00 : f32
    %17 = vector.broadcast %cst_12 : f32 to vector<8x128xf32>
    %18 = arith.maximumf %16, %17 : vector<8x128xf32>
    %19 = arith.truncf %18 : vector<8x128xf32> to vector<8x128xbf16>
    %c2 = arith.constant 2 : index
    %c0_13 = arith.constant 0 : index
    %c0_14 = arith.constant 0 : index
    %20 = vector.load %arg2[%c2, %c0_13, %c0_14] : memref<3x128x128xbf16, #tpu.memory_space<vmem>>, vector<1x128x128xbf16>
    %21 = vector.shape_cast %20 : vector<1x128x128xbf16> to vector<128x128xbf16>
    %cst_15 = arith.constant dense<0.000000e+00> : vector<8x128xf32>
    %22 = tpu.matmul %19, %21, %cst_15 {dimension_numbers = #tpu.dot_dimension_numbers<[1], [0], [0], [1], [0, 0, 1, 1], [], []>} : vector<8x128xbf16>, vector<128x128xbf16>, vector<8x128xf32> -> vector<8x128xf32>
    %c2_16 = arith.constant 2 : index
    %c0_17 = arith.constant 0 : index
    %23 = vector.load %arg3[%c2_16, %c0_17] : memref<3x128xf32, #tpu.memory_space<vmem>>, vector<1x128xf32>
    %24 = vector.broadcast %23 : vector<1x128xf32> to vector<8x128xf32>
    %25 = arith.addf %22, %24 : vector<8x128xf32>
    %c0_18 = arith.constant 0 : index
    %c0_19 = arith.constant 0 : index
    %26 = vector.load %arg4[%c0_18, %c0_19] : memref<8x128xf32, #tpu.memory_space<vmem>>, vector<8x128xf32>
    tpu.vector_store %arg4[%c0_18, %c0_19], %25 {strides = array<i32>} : memref<8x128xf32, #tpu.memory_space<vmem>>, vector<8x128xf32>,
    return
  }
  func.func @transform_0(%arg0: i32) -> (i32, i32) {
    %c0_i32 = arith.constant 0 : i32
    %c0_i32_0 = arith.constant 0 : i32
    return %arg0, %c0_i32 : i32, i32
  }
  func.func @transform_1(%arg0: i32) -> (i32, i32, i32) {
    %c0_i32 = arith.constant 0 : i32
    %c0_i32_0 = arith.constant 0 : i32
    %c0_i32_1 = arith.constant 0 : i32
    %c0_i32_2 = arith.constant 0 : i32
    return %c0_i32, %c0_i32_0, %c0_i32_1 : i32, i32, i32
  }
  func.func @transform_2(%arg0: i32) -> (i32, i32) {
    %c0_i32 = arith.constant 0 : i32
    %c0_i32_0 = arith.constant 0 : i32
    %c0_i32_1 = arith.constant 0 : i32
    return %c0_i32, %c0_i32_0 : i32, i32
  }
  func.func @transform_3(%arg0: i32) -> (i32, i32) {
    %c0_i32 = arith.constant 0 : i32
    %c0_i32_0 = arith.constant 0 : i32
    return %arg0, %c0_i32 : i32, i32
  }
}

</mosaic_0001>

<llo_original>
// kernel: tpu_custom_call.1
$region0: #{tpu_custom_call.1}
  #allocation0 [shape = 'u32[]', space=smem, size = 0x4, offset = 0x4, fixed_abs, tag = 'smem constant byte address 0x4 - core index']
  #allocation1 [shape = 'u32[144,128]{1,0:T(1,128)}', space=vmem, size = 0x12000, scoped, tag = 'internal scratch']
  %s0 = inlined_call_operand.hbm [shape: f32[8,32], index: 0, kind: input, shape index: {}]
  %s1 = inlined_call_operand.hbm [shape: bf16[3,128,128], index: 1, kind: input, shape index: {}]
  %s2 = inlined_call_operand.hbm [shape: f32[3,128], index: 2, kind: input, shape index: {}]
  %s3 = inlined_call_operand.hbm [shape: f32[8,128], index: 3, kind: output, shape index: {}]
  %s4 = sld [smem:[#allocation0]]
  $region34: #{tpu_custom_call.1} parent=0
    _
  %s6 = ssub.s32 1, %s4
  %s7 = scalar_select 0, %s6, %s4
  $region1: #{tpu_custom_call.1} parent=0
    #allocation2 [shape = 'u8[4096]{0}', space=vmem, size = 0x1000, scoped, tag = 'input window, operand 0, single buffered']
    #allocation3 [shape = 's32[1]{0}', space=sflag, size = 0x4, scoped, tag = 'scoped memory for tpu_custom_call.1']
    #allocation4 [shape = 's32[1]{0}', space=sflag, size = 0x4, scoped, tag = 'scoped memory for tpu_custom_call.1']
    #allocation5 [shape = 'u8[98304]{0}', space=vmem, size = 0x18000, scoped, tag = 'input window, operand 1, single buffered']
    #allocation6 [shape = 's32[1]{0}', space=sflag, size = 0x4, scoped, tag = 'scoped memory for tpu_custom_call.1']
    #allocation7 [shape = 'u8[2048]{0}', space=vmem, size = 0x800, scoped, tag = 'input window, operand 2, single buffered']
    #allocation8 [shape = 'u8[4096]{0}', space=vmem, size = 0x1000, scoped, tag = 'output window, operand 0, single buffered']
    %8 = vsyncpa [#allocation3], 0
    %9 = vsyncpa [#allocation6], 0
    %10 = vsyncpa [#allocation4], 0
    // Predicated region
    $region2: #{tpu_custom_call.1} parent=1 // pred_check
      _
    $region3: #{tpu_custom_call.1} parent=1 // pred_check_branch
      %12 = sbr.rel (0) target = $region5
    $region4: #{tpu_custom_call.1} parent=1 // pred_region
      %s14 = ssub.s32 128, 128
      %15 = vsyncadd [#allocation3], %s14
      %s17 = sshll.u32 [#allocation2], 4
      %s18 = int_to_ptr.vmem [resolvable:$true] %s17
      %20 = dma.hbm_to_vmem [thread:$0]  %s0, 128, %s18, [#allocation3]
    $region5: #{tpu_custom_call.1} parent=1 // pred_fallthru
      _
    // Predicated region
    $region6: #{tpu_custom_call.1} parent=1 // pred_check
      _
    $region7: #{tpu_custom_call.1} parent=1 // pred_check_branch
      %22 = sbr.rel (0) target = $region9
    $region8: #{tpu_custom_call.1} parent=1 // pred_region
      %s24 = ssub.s32 3072, 3072
      %25 = vsyncadd [#allocation6], %s24
      %s26 = sshll.u32 [#allocation5], 4
      %s27 = int_to_ptr.vmem [resolvable:$true] %s26
      %32 = dma.hbm_to_vmem [thread:$0]  %s1, 3072, %s27, [#allocation6], 64, 64, 4
    $region9: #{tpu_custom_call.1} parent=1 // pred_fallthru
      _
    // Predicated region
    $region10: #{tpu_custom_call.1} parent=1 // pred_check
      _
    $region11: #{tpu_custom_call.1} parent=1 // pred_check_branch
      %34 = sbr.rel (0) target = $region13
    $region12: #{tpu_custom_call.1} parent=1 // pred_region
      %s36 = ssub.s32 64, 64
      %37 = vsyncadd [#allocation6], %s36
      %s39 = sshll.u32 [#allocation7], 4
      %s40 = int_to_ptr.vmem [resolvable:$true] %s39
      %42 = dma.hbm_to_vmem [thread:$0]  %s2, 64, %s40, [#allocation6]
    $region13: #{tpu_custom_call.1} parent=1 // pred_fallthru
      _
    // Predicated region
    $region14: #{tpu_custom_call.1} parent=1 // pred_check
      _
    $region15: #{tpu_custom_call.1} parent=1 // pred_check_branch
      %44 = sbr.rel (0) target = $region17
    $region16: #{tpu_custom_call.1} parent=1 // pred_region
      %45 = dma.done [#allocation3], 128
    $region17: #{tpu_custom_call.1} parent=1 // pred_fallthru
      _
    // Predicated region
    $region18: #{tpu_custom_call.1} parent=1 // pred_check
      _
    $region19: #{tpu_custom_call.1} parent=1 // pred_check_branch
      %47 = sbr.rel (0) target = $region21
    $region20: #{tpu_custom_call.1} parent=1 // pred_region
      %48 = dma.done [#allocation6], 3072
    $region21: #{tpu_custom_call.1} parent=1 // pred_fallthru
      _
    // Predicated region
    $region22: #{tpu_custom_call.1} parent=1 // pred_check
      _
    $region23: #{tpu_custom_call.1} parent=1 // pred_check_branch
      %50 = sbr.rel (0) target = $region25
    $region24: #{tpu_custom_call.1} parent=1 // pred_region
      %51 = dma.done [#allocation6], 64
    $region25: #{tpu_custom_call.1} parent=1 // pred_fallthru
      _
    %v53 = vld [vmem:[#allocation2] sm:$0xff]
    %v54 = vpack.c.bf16 %v53, %v53
    %v55 = vld [vmem:[#allocation5] sm:$0xf]
    %v56 = vld [vmem:[#allocation5 + $0x4] sm:$0xf]
    %v57 = vld [vmem:[#allocation5 + $0x8] sm:$0xf]
    %v58 = vld [vmem:[#allocation5 + $0xc] sm:$0xf]
    %v59 = vld [vmem:[#allocation7] sm:$0x1]
    %v60 = vlaneseq
    %v61 = vshrl.u32 %v60, 7
    %v62 = vsub.s32 0, %v61
    %v63 = vrot.slane %v59, %v62
    %v68 = vunpack.c.l.b16 %v55
    %v69 = vunpack.c.l.b16 %v56
    %v70 = vunpack.c.l.b16 %v57
    %v71 = vunpack.c.l.b16 %v58
    %v72 = vpack.c.b16 %v69, %v68
    %v73 = vpack.c.b16 %v71, %v70
    %vm76 = vcmask 261120
    %v78 = vsel %vm76, %v54, 0
    %80 = vmatprep.subr.bf16.mxu0 0
    %81 = vmatpush1.bf16.msra.mxu0 0
    %82 = vmatprep.subr.bf16.mxu0 0
    %83 = vmatpush1.bf16.msra.mxu0 0
    %84 = vmatprep.subr.bf16.mxu0 0
    %85 = vmatpush1.bf16.msra.mxu0 0
    %86 = vmatprep.subr.bf16.mxu0 0
    %87 = vmatpush1.bf16.msra.mxu0 0
    %88 = vmatprep.subr.bf16.mxu0 0
    %89 = vmatpush1.bf16.msra.mxu0 0
    %90 = vmatprep.subr.bf16.mxu0 0
    %91 = vmatpush1.bf16.msra.mxu0 0
    %92 = vmatprep.subr.bf16.mxu0 0
    %93 = vmatpush1.bf16.msra.mxu0 %v73
    %94 = vmatprep.subr.bf16.mxu0 0
    %95 = vmatpush1.bf16.msra.mxu0 %v72
    %96 = vmatprep.subr.bf16.mxu0 0
    %97 = vmatpush2.bf16.msra.mxu0 0
    %98 = vmatprep.subr.bf16.mxu0 0
    %99 = vmatpush2.bf16.msra.mxu0 0
    %100 = vmatprep.subr.bf16.mxu0 0
    %101 = vmatpush2.bf16.msra.mxu0 0
    %102 = vmatprep.subr.bf16.mxu0 0
    %103 = vmatpush2.bf16.msra.mxu0 0
    %104 = vmatprep.subr.bf16.mxu0 0
    %105 = vmatpush2.bf16.msra.mxu0 0
    %106 = vmatprep.subr.bf16.mxu0 0
    %107 = vmatpush2.bf16.msra.mxu0 0
    %108 = vmatprep.subr.bf16.mxu0 0
    %109 = vmatpush2.bf16.msra.mxu0 0
    %110 = vmatprep.subr.bf16.mxu0 0
    %111 = vmatpush2.bf16.msra.mxu0 0
    %112 = vmatprep.mubr.bf16.mxu0 0
    %113 = vmatmul.mubr.bf16.gmra.mxu0 %v78
    %v114 = vpop.f32.mrf.mxu0
    %v115 = vadd.f32 %v63, %v114
    %v116 = vpop.f32.mrf.mxu0
    %v117 = vpop.f32.mrf.mxu0
    %v118 = vpop.f32.mrf.mxu0
    %119 = vdwg.mxu0
    %v120 = vmax.f32 %v115, 0.0
    %v121 = vpack.c.bf16 %v120, %v120
    %s122 = scalar_lea.vmem [#allocation5], 64
    %v123 = vld [vmem:[%s122] sm:$0xf]
    %v124 = vld [vmem:[%s122 + $0x4] sm:$0xf]
    %v125 = vld [vmem:[%s122 + $0x8] sm:$0xf]
    %v126 = vld [vmem:[%s122 + $0xc] sm:$0xf]
    %v127 = vld [vmem:[%s122 + $0x10] sm:$0xf]
    %v128 = vld [vmem:[%s122 + $0x14] sm:$0xf]
    %v129 = vld [vmem:[%s122 + $0x18] sm:$0xf]
    %v130 = vld [vmem:[%s122 + $0x1c] sm:$0xf]
    %v131 = vld [vmem:[%s122 + $0x20] sm:$0xf]
    %v132 = vld [vmem:[%s122 + $0x24] sm:$0xf]
    %v133 = vld [vmem:[%s122 + $0x28] sm:$0xf]
    %v134 = vld [vmem:[%s122 + $0x2c] sm:$0xf]
    %v135 = vld [vmem:[%s122 + $0x30] sm:$0xf]
    %v136 = vld [vmem:[%s122 + $0x34] sm:$0xf]
    %v137 = vld [vmem:[%s122 + $0x38] sm:$0xf]
    %v138 = vld [vmem:[%s122 + $0x3c] sm:$0xf]
    %v139 = vld [vmem:[#allocation7 + $0x1] sm:$0x1]
    %v140 = vlaneseq
    %v141 = vshrl.u32 %v140, 7
    %v142 = vsub.s32 0, %v141
    %v143 = vrot.slane %v139, %v142
    %v160 = vunpack.c.l.b16 %v123
    %v161 = vunpack.c.l.b16 %v124
    %v162 = vunpack.c.l.b16 %v125
    %v163 = vunpack.c.l.b16 %v126
    %v164 = vunpack.c.l.b16 %v127
    %v165 = vunpack.c.l.b16 %v128
    %v166 = vunpack.c.l.b16 %v129
    %v167 = vunpack.c.l.b16 %v130
    %v168 = vunpack.c.l.b16 %v131
    %v169 = vunpack.c.l.b16 %v132
    %v170 = vunpack.c.l.b16 %v133
    %v171 = vunpack.c.l.b16 %v134
    %v172 = vunpack.c.l.b16 %v135
    %v173 = vunpack.c.l.b16 %v136
    %v174 = vunpack.c.l.b16 %v137
    %v175 = vunpack.c.l.b16 %v138
    %v176 = vpack.c.b16 %v161, %v160
    %v177 = vpack.c.b16 %v163, %v162
    %v178 = vpack.c.b16 %v165, %v164
    %v179 = vpack.c.b16 %v167, %v166
    %v180 = vpack.c.b16 %v169, %v168
    %v181 = vpack.c.b16 %v171, %v170
    %v182 = vpack.c.b16 %v173, %v172
    %v183 = vpack.c.b16 %v175, %v174
    %192 = vmatprep.subr.bf16.mxu0 0
    %193 = vmatpush1.bf16.msra.mxu0 %v183
    %194 = vmatprep.subr.bf16.mxu0 0
    %195 = vmatpush1.bf16.msra.mxu0 %v182
    %196 = vmatprep.subr.bf16.mxu0 0
    %197 = vmatpush1.bf16.msra.mxu0 %v181
    %198 = vmatprep.subr.bf16.mxu0 0
    %199 = vmatpush1.bf16.msra.mxu0 %v180
    %200 = vmatprep.subr.bf16.mxu0 0
    %201 = vmatpush1.bf16.msra.mxu0 %v179
    %202 = vmatprep.subr.bf16.mxu0 0
    %203 = vmatpush1.bf16.msra.mxu0 %v178
    %204 = vmatprep.subr.bf16.mxu0 0
    %205 = vmatpush1.bf16.msra.mxu0 %v177
    %206 = vmatprep.subr.bf16.mxu0 0
    %207 = vmatpush1.bf16.msra.mxu0 %v176
    %208 = vmatprep.subr.bf16.mxu0 0
    %209 = vmatpush2.bf16.msra.mxu0 0
    %210 = vmatprep.subr.bf16.mxu0 0
    %211 = vmatpush2.bf16.msra.mxu0 0
    %212 = vmatprep.subr.bf16.mxu0 0
    %213 = vmatpush2.bf16.msra.mxu0 0
    %214 = vmatprep.subr.bf16.mxu0 0
    %215 = vmatpush2.bf16.msra.mxu0 0
    %216 = vmatprep.subr.bf16.mxu0 0
    %217 = vmatpush2.bf16.msra.mxu0 0
    %218 = vmatprep.subr.bf16.mxu0 0
    %219 = vmatpush2.bf16.msra.mxu0 0
    %220 = vmatprep.subr.bf16.mxu0 0
    %221 = vmatpush2.bf16.msra.mxu0 0
    %222 = vmatprep.subr.bf16.mxu0 0
    %223 = vmatpush2.bf16.msra.mxu0 0
    %224 = vmatprep.mubr.bf16.mxu0 0
    %225 = vmatmul.mubr.bf16.gmra.mxu0 %v121
    %v226 = vpop.f32.mrf.mxu0
    %v227 = vadd.f32 %v143, %v226
    %v228 = vpop.f32.mrf.mxu0
    %v229 = vpop.f32.mrf.mxu0
    %v230 = vpop.f32.mrf.mxu0
    %231 = vdwg.mxu0
    %v232 = vmax.f32 %v227, 0.0
    %v233 = vpack.c.bf16 %v232, %v232
    %s234 = scalar_lea.vmem [#allocation5], 128
    %v235 = vld [vmem:[%s234] sm:$0xf]
    %v236 = vld [vmem:[%s234 + $0x4] sm:$0xf]
    %v237 = vld [vmem:[%s234 + $0x8] sm:$0xf]
    %v238 = vld [vmem:[%s234 + $0xc] sm:$0xf]
    %v239 = vld [vmem:[%s234 + $0x10] sm:$0xf]
    %v240 = vld [vmem:[%s234 + $0x14] sm:$0xf]
    %v241 = vld [vmem:[%s234 + $0x18] sm:$0xf]
    %v242 = vld [vmem:[%s234 + $0x1c] sm:$0xf]
    %v243 = vld [vmem:[%s234 + $0x20] sm:$0xf]
    %v244 = vld [vmem:[%s234 + $0x24] sm:$0xf]
    %v245 = vld [vmem:[%s234 + $0x28] sm:$0xf]
    %v246 = vld [vmem:[%s234 + $0x2c] sm:$0xf]
    %v247 = vld [vmem:[%s234 + $0x30] sm:$0xf]
    %v248 = vld [vmem:[%s234 + $0x34] sm:$0xf]
    %v249 = vld [vmem:[%s234 + $0x38] sm:$0xf]
    %v250 = vld [vmem:[%s234 + $0x3c] sm:$0xf]
    %v251 = vld [vmem:[#allocation7 + $0x2] sm:$0x1]
    %v252 = vlaneseq
    %v253 = vshrl.u32 %v252, 7
    %v254 = vsub.s32 0, %v253
    %v255 = vrot.slane %v251, %v254
    %v272 = vunpack.c.l.b16 %v235
    %v273 = vunpack.c.l.b16 %v236
    %v274 = vunpack.c.l.b16 %v237
    %v275 = vunpack.c.l.b16 %v238
    %v276 = vunpack.c.l.b16 %v239
    %v277 = vunpack.c.l.b16 %v240
    %v278 = vunpack.c.l.b16 %v241
    %v279 = vunpack.c.l.b16 %v242
    %v280 = vunpack.c.l.b16 %v243
    %v281 = vunpack.c.l.b16 %v244
    %v282 = vunpack.c.l.b16 %v245
    %v283 = vunpack.c.l.b16 %v246
    %v284 = vunpack.c.l.b16 %v247
    %v285 = vunpack.c.l.b16 %v248
    %v286 = vunpack.c.l.b16 %v249
    %v287 = vunpack.c.l.b16 %v250
    %v288 = vpack.c.b16 %v273, %v272
    %v289 = vpack.c.b16 %v275, %v274
    %v290 = vpack.c.b16 %v277, %v276
    %v291 = vpack.c.b16 %v279, %v278
    %v292 = vpack.c.b16 %v281, %v280
    %v293 = vpack.c.b16 %v283, %v282
    %v294 = vpack.c.b16 %v285, %v284
    %v295 = vpack.c.b16 %v287, %v286
    %304 = vmatprep.subr.bf16.mxu0 0
    %305 = vmatpush1.bf16.msra.mxu0 %v295
    %306 = vmatprep.subr.bf16.mxu0 0
    %307 = vmatpush1.bf16.msra.mxu0 %v294
    %308 = vmatprep.subr.bf16.mxu0 0
    %309 = vmatpush1.bf16.msra.mxu0 %v293
    %310 = vmatprep.subr.bf16.mxu0 0
    %311 = vmatpush1.bf16.msra.mxu0 %v292
    %312 = vmatprep.subr.bf16.mxu0 0
    %313 = vmatpush1.bf16.msra.mxu0 %v291
    %314 = vmatprep.subr.bf16.mxu0 0
    %315 = vmatpush1.bf16.msra.mxu0 %v290
    %316 = vmatprep.subr.bf16.mxu0 0
    %317 = vmatpush1.bf16.msra.mxu0 %v289
    %318 = vmatprep.subr.bf16.mxu0 0
    %319 = vmatpush1.bf16.msra.mxu0 %v288
    %320 = vmatprep.subr.bf16.mxu0 0
    %321 = vmatpush2.bf16.msra.mxu0 0
    %322 = vmatprep.subr.bf16.mxu0 0
    %323 = vmatpush2.bf16.msra.mxu0 0
    %324 = vmatprep.subr.bf16.mxu0 0
    %325 = vmatpush2.bf16.msra.mxu0 0
    %326 = vmatprep.subr.bf16.mxu0 0
    %327 = vmatpush2.bf16.msra.mxu0 0
    %328 = vmatprep.subr.bf16.mxu0 0
    %329 = vmatpush2.bf16.msra.mxu0 0
    %330 = vmatprep.subr.bf16.mxu0 0
    %331 = vmatpush2.bf16.msra.mxu0 0
    %332 = vmatprep.subr.bf16.mxu0 0
    %333 = vmatpush2.bf16.msra.mxu0 0
    %334 = vmatprep.subr.bf16.mxu0 0
    %335 = vmatpush2.bf16.msra.mxu0 0
    %336 = vmatprep.mubr.bf16.mxu0 0
    %337 = vmatmul.mubr.bf16.gmra.mxu0 %v233
    %v338 = vpop.f32.mrf.mxu0
    %v339 = vadd.f32 %v255, %v338
    %v340 = vpop.f32.mrf.mxu0
    %v341 = vpop.f32.mrf.mxu0
    %v342 = vpop.f32.mrf.mxu0
    %343 = vdwg.mxu0
    %344 = vst [vmem:[#allocation8] sm:$0xff] %v339
    // Predicated region
    $region26: #{tpu_custom_call.1} parent=1 // pred_check
      _
    $region27: #{tpu_custom_call.1} parent=1 // pred_check_branch
      %346 = sbr.rel (0) target = $region29
    $region28: #{tpu_custom_call.1} parent=1 // pred_region
      %s348 = ssub.s32 128, 128
      %349 = vsyncadd [#allocation4], %s348
      %s351 = sshll.u32 [#allocation8], 4
      %s352 = int_to_ptr.vmem [resolvable:$true] %s351
      %354 = dma.vmem_to_hbm [thread:$0]  %s352, 128, %s3, [#allocation4]
    $region29: #{tpu_custom_call.1} parent=1 // pred_fallthru
      _
    // Predicated region
    $region30: #{tpu_custom_call.1} parent=1 // pred_check
      _
    $region31: #{tpu_custom_call.1} parent=1 // pred_check_branch
      %356 = sbr.rel (0) target = $region33
    $region32: #{tpu_custom_call.1} parent=1 // pred_region
      %357 = dma.done [#allocation4], 128
    $region33: #{tpu_custom_call.1} parent=1 // pred_fallthru
      _
    %358 = vsyncpa [#allocation3], 1
    %359 = vsyncpa [#allocation6], 1
    %360 = vsyncpa [#allocation4], 1

</llo_original>
